<compile_context>
chip_gen: v7x
topology: tpu7x:2x2x1
jax: 0.10.0
libtpu: 0.0.40
codegen_flags: <defaults>
</compile_context>

<pallas_src>
import jax
import jax.numpy as jnp
from jax.experimental import pallas as pl
from jax.experimental.pallas import tpu as pltpu

NUM_CAT = 15  # 15 copies of v concatenated along the last axis


def _cat_mm_kernel(x1_ref, x2_ref, o_ref, acc_ref):
    k = pl.program_id(2)

    # MXU matmul with f32 accumulation. bf16 inputs take the native fast path
    # on v6e/v7x; f32 inputs use the default MXU precision path (tests below
    # use small-integer-valued data so the comparison is exact either way).
    part = jnp.dot(x1_ref[...], x2_ref[...], preferred_element_type=jnp.float32)

    @pl.when(k == 0)
    def _first():
        # Write directly on the first K step: no separate zero-init pass.
        acc_ref[...] = part

    @pl.when(k > 0)
    def _accumulate():
        acc_ref[...] += part

    @pl.when(k == pl.num_programs(2) - 1)
    def _finalize():
        v = acc_ref[...].astype(o_ref.dtype)
        # 15 narrow (tm, tn) stores instead of materializing a (tm, 15, tn)
        # broadcast in vregs; lane-dense when tn % 128 == 0. The whole
        # (tm, 15, tn) block is written back to HBM once per (i, j) tile.
        for c in range(NUM_CAT):
            o_ref[:, c, :] = v


def _largest_tile(dim, unit, cap):
    """Largest multiple of `unit` that divides `dim` and is <= cap, else None."""
    best = None
    t = unit
    while t <= min(dim, cap):
        if dim % t == 0:
            best = t
        t += unit
    return best


def _vmem_budget_bytes():
    """~75% of this generation's physical VMEM (v5e/v6e: 128 MiB, v7x: 64 MiB)."""
    cap = 64 * 1024 * 1024  # conservative default (v7x per-TensorCore VMEM)
    try:
        cap = int(getattr(pltpu.get_tpu_info(), "vmem_capacity_bytes", cap))
    except Exception:
        pass
    return (3 * cap) // 4


def _pick_tiles(M, K, N, budget, itemsize):
    """Pick (tm, tk, tn) so the double-buffered working set fits `budget`."""

    def usage(tm, tk, tn):
        # double-buffered x1 / x2 / output blocks + f32 accumulator scratch
        return (itemsize * 2 * (tm * tk + tk * tn)
                + itemsize * 2 * tm * NUM_CAT * tn
                + 4 * tm * tn)

    tm = _largest_tile(M, 8, 256) or M
    tn = _largest_tile(N, 128, 512) or N
    # Prefer a single K step when it fits: x1/x2 become K-resident (no
    # re-fetch along k) and the accumulation carry disappears entirely.
    if usage(tm, K, tn) <= budget:
        tk = K
    else:
        tk = _largest_tile(K, 128, 1024) or K

    # Shrink the output-dominated dims first if we are still over budget.
    while usage(tm, tk, tn) > budget and tn % 256 == 0:
        tn //= 2
    while usage(tm, tk, tn) > budget and tm % 16 == 0:
        tm //= 2
    while usage(tm, tk, tn) > budget and tk % 256 == 0:
        tk //= 2
    # TODO(synk): for awkward huge shapes with no aligned divisor the
    # full-extent fallback could still exceed the budget; pad or use a cdiv
    # grid with masked edge tiles in that case.
    return tm, tk, tn


@jax.jit
def cat_mm(x1, x2):
    M, K = x1.shape
    K2, N = x2.shape
    assert K == K2

    out_dtype = jnp.result_type(x1.dtype, x2.dtype)
    budget = _vmem_budget_bytes()
    tm, tk, tn = _pick_tiles(M, K, N, budget, jnp.dtype(out_dtype).itemsize)
    grid = (M // tm, N // tn, K // tk)

    # The (M, 15*N) concat result is produced through its (M, 15, N) row-major
    # view (same memory), which lets the output BlockSpec tile N.
    out3 = pl.pallas_call(
        _cat_mm_kernel,
        out_shape=jax.ShapeDtypeStruct((M, NUM_CAT, N), out_dtype),
        grid_spec=pltpu.PrefetchScalarGridSpec(
            num_scalar_prefetch=0,
            grid=grid,
            in_specs=[
                pl.BlockSpec((tm, tk), lambda i, j, k: (i, k)),
                pl.BlockSpec((tk, tn), lambda i, j, k: (k, j)),
            ],
            # Output block index is constant along k -> resident across the
            # reduction, DMA'd to HBM exactly once per (i, j) tile.
            out_specs=pl.BlockSpec((tm, NUM_CAT, tn), lambda i, j, k: (i, 0, j)),
            scratch_shapes=[pltpu.VMEM((tm, tn), jnp.float32)],
        ),
        compiler_params=pltpu.CompilerParams(
            dimension_semantics=("parallel", "parallel", "arbitrary"),
            vmem_limit_bytes=int(budget),
        ),
    )(x1, x2)
    return out3.reshape(M, NUM_CAT * N)


if __name__ == "__main__":
    key = jax.random.PRNGKey(0)
    k1, k2, k3, k4, k5, k6 = jax.random.split(key, 6)

    # 1) Spec shapes (4x4): single full-extent block (below the architecture
    # floor). Small-integer-valued inputs make the matmul exact regardless of
    # the MXU precision path.
    x1 = jax.random.randint(k1, (4, 4), -3, 4).astype(jnp.float32)
    x2 = jax.random.randint(k2, (4, 4), -3, 4).astype(jnp.float32)
    out = jax.block_until_ready(cat_mm(x1, x2))
    ref = jnp.tile(jnp.dot(x1, x2, preferred_element_type=jnp.float32), (1, NUM_CAT))
    assert out.shape == (4, NUM_CAT * 4), out.shape
    assert out.dtype == jnp.float32, out.dtype
    assert jnp.allclose(out, ref, atol=1e-5, rtol=1e-5)

    # 2) Awkward shapes exercise the full-extent fallback (no aligned divisor).
    a1 = jax.random.randint(k3, (12, 20), -3, 4).astype(jnp.float32)
    b1 = jax.random.randint(k4, (20, 36), -3, 4).astype(jnp.float32)
    out1 = jax.block_until_ready(cat_mm(a1, b1))
    ref1 = jnp.tile(jnp.dot(a1, b1, preferred_element_type=jnp.float32), (1, NUM_CAT))
    assert out1.shape == (12, NUM_CAT * 36), out1.shape
    assert jnp.allclose(out1, ref1, atol=1e-4, rtol=1e-4)

    # 3) Larger shape exercises the tiled, pipelined path: tm=256, tn=512,
    # single K step (tk=K=1024) -> grid (2, 2, 1); two M-tiles x two N-tiles
    # shard across the v7x TensorCores.
    a2 = jax.random.randint(k5, (512, 1024), -2, 3).astype(jnp.float32)
    b2 = jax.random.randint(k6, (1024, 1024), -2, 3).astype(jnp.float32)
    out2 = jax.block_until_ready(cat_mm(a2, b2))
    ref2 = jnp.tile(jnp.dot(a2, b2, preferred_element_type=jnp.float32), (1, NUM_CAT))
    assert out2.shape == (512, NUM_CAT * 1024), out2.shape
    assert jnp.allclose(out2, ref2, atol=1e-3, rtol=1e-3)

    print("KERNEL_OK")
</pallas_src>

<mosaic_0001>
module attributes {stable_mosaic.version = 11 : i64} {
  func.func @_cat_mm_kernel(%arg0: i32, %arg1: i32, %arg2: i32, %arg3: memref<4x4xf32, #tpu.memory_space<vmem>>, %arg4: memref<4x4xf32, #tpu.memory_space<vmem>>, %arg5: memref<4x15x4xf32, #tpu.memory_space<vmem>>, %arg6: memref<4x4xf32, #tpu.memory_space<vmem>>) attributes {dimension_semantics = [#tpu.dimension_semantics<parallel>, #tpu.dimension_semantics<parallel>, #tpu.dimension_semantics<arbitrary>], iteration_bounds = array<i64: 1, 1, 1>, scalar_prefetch = 0 : i64, scratch_operands = 1 : i64, tpu.core_type = #tpu.core_type<tc>, window_params = [{transform_indices = @transform_0, window_bounds = array<i64: 4, 4>}, {transform_indices = @transform_1, window_bounds = array<i64: 4, 4>}, {transform_indices = @transform_2, window_bounds = array<i64: 4, 15, 4>}]} {
    %c0 = arith.constant 0 : index
    %c0_0 = arith.constant 0 : index
    %0 = vector.load %arg3[%c0, %c0_0] : memref<4x4xf32, #tpu.memory_space<vmem>>, vector<4x4xf32>
    %c0_1 = arith.constant 0 : index
    %c0_2 = arith.constant 0 : index
    %1 = vector.load %arg4[%c0_1, %c0_2] : memref<4x4xf32, #tpu.memory_space<vmem>>, vector<4x4xf32>
    %cst = arith.constant dense<0.000000e+00> : vector<4x4xf32>
    %2 = tpu.matmul %0, %1, %cst {dimension_numbers = #tpu.dot_dimension_numbers<[1], [0], [0], [1], [0, 0, 1, 1], [], []>} : vector<4x4xf32>, vector<4x4xf32>, vector<4x4xf32> -> vector<4x4xf32>
    %c0_i32 = arith.constant 0 : i32
    %3 = arith.cmpi eq, %arg2, %c0_i32 : i32
    %4 = arith.extui %3 : i1 to i32
    %c0_i32_3 = arith.constant 0 : i32
    %5 = arith.cmpi ne, %4, %c0_i32_3 : i32
    scf.if %5 {
      %c0_8 = arith.constant 0 : index
      %c0_9 = arith.constant 0 : index
      %12 = vector.load %arg6[%c0_8, %c0_9] : memref<4x4xf32, #tpu.memory_space<vmem>>, vector<4x4xf32>
      tpu.vector_store %arg6[%c0_8, %c0_9], %2 {strides = array<i32>} : memref<4x4xf32, #tpu.memory_space<vmem>>, vector<4x4xf32>,
    } else {
    }
    %c0_i32_4 = arith.constant 0 : i32
    %6 = arith.cmpi sgt, %arg2, %c0_i32_4 : i32
    %7 = arith.extui %6 : i1 to i32
    %c0_i32_5 = arith.constant 0 : i32
    %8 = arith.cmpi ne, %7, %c0_i32_5 : i32
    scf.if %8 {
      %c0_8 = arith.constant 0 : index
      %c0_9 = arith.constant 0 : index
      %12 = vector.load %arg6[%c0_8, %c0_9] : memref<4x4xf32, #tpu.memory_space<vmem>>, vector<4x4xf32>
      %13 = arith.addf %12, %2 : vector<4x4xf32>
      %c0_10 = arith.constant 0 : index
      %c0_11 = arith.constant 0 : index
      %14 = vector.load %arg6[%c0_10, %c0_11] : memref<4x4xf32, #tpu.memory_space<vmem>>, vector<4x4xf32>
      tpu.vector_store %arg6[%c0_10, %c0_11], %13 {strides = array<i32>} : memref<4x4xf32, #tpu.memory_space<vmem>>, vector<4x4xf32>,
    } else {
    }
    %c0_i32_6 = arith.constant 0 : i32
    %9 = arith.cmpi eq, %arg2, %c0_i32_6 : i32
    %10 = arith.extui %9 : i1 to i32
    %c0_i32_7 = arith.constant 0 : i32
    %11 = arith.cmpi ne, %10, %c0_i32_7 : i32
    scf.if %11 {
      %c0_8 = arith.constant 0 : index
      %c0_9 = arith.constant 0 : index
      %12 = vector.load %arg6[%c0_8, %c0_9] : memref<4x4xf32, #tpu.memory_space<vmem>>, vector<4x4xf32>
      %c0_10 = arith.constant 0 : index
      %c0_11 = arith.constant 0 : index
      %c0_12 = arith.constant 0 : index
      %13 = vector.load %arg5[%c0_10, %c0_11, %c0_12] : memref<4x15x4xf32, #tpu.memory_space<vmem>>, vector<4x1x4xf32>
      %14 = vector.shape_cast %13 : vector<4x1x4xf32> to vector<4x4xf32>
      %15 = vector.shape_cast %12 : vector<4x4xf32> to vector<4x1x4xf32>
      tpu.vector_store %arg5[%c0_10, %c0_11, %c0_12], %15 {strides = array<i32>} : memref<4x15x4xf32, #tpu.memory_space<vmem>>, vector<4x1x4xf32>,
      %c0_13 = arith.constant 0 : index
      %c1 = arith.constant 1 : index
      %c0_14 = arith.constant 0 : index
      %16 = vector.load %arg5[%c0_13, %c1, %c0_14] : memref<4x15x4xf32, #tpu.memory_space<vmem>>, vector<4x1x4xf32>
      %17 = vector.shape_cast %16 : vector<4x1x4xf32> to vector<4x4xf32>
      %18 = vector.shape_cast %12 : vector<4x4xf32> to vector<4x1x4xf32>
      tpu.vector_store %arg5[%c0_13, %c1, %c0_14], %18 {strides = array<i32>} : memref<4x15x4xf32, #tpu.memory_space<vmem>>, vector<4x1x4xf32>,
      %c0_15 = arith.constant 0 : index
      %c2 = arith.constant 2 : index
      %c0_16 = arith.constant 0 : index
      %19 = vector.load %arg5[%c0_15, %c2, %c0_16] : memref<4x15x4xf32, #tpu.memory_space<vmem>>, vector<4x1x4xf32>
      %20 = vector.shape_cast %19 : vector<4x1x4xf32> to vector<4x4xf32>
      %21 = vector.shape_cast %12 : vector<4x4xf32> to vector<4x1x4xf32>
      tpu.vector_store %arg5[%c0_15, %c2, %c0_16], %21 {strides = array<i32>} : memref<4x15x4xf32, #tpu.memory_space<vmem>>, vector<4x1x4xf32>,
      %c0_17 = arith.constant 0 : index
      %c3 = arith.constant 3 : index
      %c0_18 = arith.constant 0 : index
      %22 = vector.load %arg5[%c0_17, %c3, %c0_18] : memref<4x15x4xf32, #tpu.memory_space<vmem>>, vector<4x1x4xf32>
      %23 = vector.shape_cast %22 : vector<4x1x4xf32> to vector<4x4xf32>
      %24 = vector.shape_cast %12 : vector<4x4xf32> to vector<4x1x4xf32>
      tpu.vector_store %arg5[%c0_17, %c3, %c0_18], %24 {strides = array<i32>} : memref<4x15x4xf32, #tpu.memory_space<vmem>>, vector<4x1x4xf32>,
      %c0_19 = arith.constant 0 : index
      %c4 = arith.constant 4 : index
      %c0_20 = arith.constant 0 : index
      %25 = vector.load %arg5[%c0_19, %c4, %c0_20] : memref<4x15x4xf32, #tpu.memory_space<vmem>>, vector<4x1x4xf32>
      %26 = vector.shape_cast %25 : vector<4x1x4xf32> to vector<4x4xf32>
      %27 = vector.shape_cast %12 : vector<4x4xf32> to vector<4x1x4xf32>
      tpu.vector_store %arg5[%c0_19, %c4, %c0_20], %27 {strides = array<i32>} : memref<4x15x4xf32, #tpu.memory_space<vmem>>, vector<4x1x4xf32>,
      %c0_21 = arith.constant 0 : index
      %c5 = arith.constant 5 : index
      %c0_22 = arith.constant 0 : index
      %28 = vector.load %arg5[%c0_21, %c5, %c0_22] : memref<4x15x4xf32, #tpu.memory_space<vmem>>, vector<4x1x4xf32>
      %29 = vector.shape_cast %28 : vector<4x1x4xf32> to vector<4x4xf32>
      %30 = vector.shape_cast %12 : vector<4x4xf32> to vector<4x1x4xf32>
      tpu.vector_store %arg5[%c0_21, %c5, %c0_22], %30 {strides = array<i32>} : memref<4x15x4xf32, #tpu.memory_space<vmem>>, vector<4x1x4xf32>,
      %c0_23 = arith.constant 0 : index
      %c6 = arith.constant 6 : index
      %c0_24 = arith.constant 0 : index
      %31 = vector.load %arg5[%c0_23, %c6, %c0_24] : memref<4x15x4xf32, #tpu.memory_space<vmem>>, vector<4x1x4xf32>
      %32 = vector.shape_cast %31 : vector<4x1x4xf32> to vector<4x4xf32>
      %33 = vector.shape_cast %12 : vector<4x4xf32> to vector<4x1x4xf32>
      tpu.vector_store %arg5[%c0_23, %c6, %c0_24], %33 {strides = array<i32>} : memref<4x15x4xf32, #tpu.memory_space<vmem>>, vector<4x1x4xf32>,
      %c0_25 = arith.constant 0 : index
      %c7 = arith.constant 7 : index
      %c0_26 = arith.constant 0 : index
      %34 = vector.load %arg5[%c0_25, %c7, %c0_26] : memref<4x15x4xf32, #tpu.memory_space<vmem>>, vector<4x1x4xf32>
      %35 = vector.shape_cast %34 : vector<4x1x4xf32> to vector<4x4xf32>
      %36 = vector.shape_cast %12 : vector<4x4xf32> to vector<4x1x4xf32>
      tpu.vector_store %arg5[%c0_25, %c7, %c0_26], %36 {strides = array<i32>} : memref<4x15x4xf32, #tpu.memory_space<vmem>>, vector<4x1x4xf32>,
      %c0_27 = arith.constant 0 : index
      %c8 = arith.constant 8 : index
      %c0_28 = arith.constant 0 : index
      %37 = vector.load %arg5[%c0_27, %c8, %c0_28] : memref<4x15x4xf32, #tpu.memory_space<vmem>>, vector<4x1x4xf32>
      %38 = vector.shape_cast %37 : vector<4x1x4xf32> to vector<4x4xf32>
      %39 = vector.shape_cast %12 : vector<4x4xf32> to vector<4x1x4xf32>
      tpu.vector_store %arg5[%c0_27, %c8, %c0_28], %39 {strides = array<i32>} : memref<4x15x4xf32, #tpu.memory_space<vmem>>, vector<4x1x4xf32>,
      %c0_29 = arith.constant 0 : index
      %c9 = arith.constant 9 : index
      %c0_30 = arith.constant 0 : index
      %40 = vector.load %arg5[%c0_29, %c9, %c0_30] : memref<4x15x4xf32, #tpu.memory_space<vmem>>, vector<4x1x4xf32>
      %41 = vector.shape_cast %40 : vector<4x1x4xf32> to vector<4x4xf32>
      %42 = vector.shape_cast %12 : vector<4x4xf32> to vector<4x1x4xf32>
      tpu.vector_store %arg5[%c0_29, %c9, %c0_30], %42 {strides = array<i32>} : memref<4x15x4xf32, #tpu.memory_space<vmem>>, vector<4x1x4xf32>,
      %c0_31 = arith.constant 0 : index
      %c10 = arith.constant 10 : index
      %c0_32 = arith.constant 0 : index
      %43 = vector.load %arg5[%c0_31, %c10, %c0_32] : memref<4x15x4xf32, #tpu.memory_space<vmem>>, vector<4x1x4xf32>
      %44 = vector.shape_cast %43 : vector<4x1x4xf32> to vector<4x4xf32>
      %45 = vector.shape_cast %12 : vector<4x4xf32> to vector<4x1x4xf32>
      tpu.vector_store %arg5[%c0_31, %c10, %c0_32], %45 {strides = array<i32>} : memref<4x15x4xf32, #tpu.memory_space<vmem>>, vector<4x1x4xf32>,
      %c0_33 = arith.constant 0 : index
      %c11 = arith.constant 11 : index
      %c0_34 = arith.constant 0 : index
      %46 = vector.load %arg5[%c0_33, %c11, %c0_34] : memref<4x15x4xf32, #tpu.memory_space<vmem>>, vector<4x1x4xf32>
      %47 = vector.shape_cast %46 : vector<4x1x4xf32> to vector<4x4xf32>
      %48 = vector.shape_cast %12 : vector<4x4xf32> to vector<4x1x4xf32>
      tpu.vector_store %arg5[%c0_33, %c11, %c0_34], %48 {strides = array<i32>} : memref<4x15x4xf32, #tpu.memory_space<vmem>>, vector<4x1x4xf32>,
      %c0_35 = arith.constant 0 : index
      %c12 = arith.constant 12 : index
      %c0_36 = arith.constant 0 : index
      %49 = vector.load %arg5[%c0_35, %c12, %c0_36] : memref<4x15x4xf32, #tpu.memory_space<vmem>>, vector<4x1x4xf32>
      %50 = vector.shape_cast %49 : vector<4x1x4xf32> to vector<4x4xf32>
      %51 = vector.shape_cast %12 : vector<4x4xf32> to vector<4x1x4xf32>
      tpu.vector_store %arg5[%c0_35, %c12, %c0_36], %51 {strides = array<i32>} : memref<4x15x4xf32, #tpu.memory_space<vmem>>, vector<4x1x4xf32>,
      %c0_37 = arith.constant 0 : index
      %c13 = arith.constant 13 : index
      %c0_38 = arith.constant 0 : index
      %52 = vector.load %arg5[%c0_37, %c13, %c0_38] : memref<4x15x4xf32, #tpu.memory_space<vmem>>, vector<4x1x4xf32>
      %53 = vector.shape_cast %52 : vector<4x1x4xf32> to vector<4x4xf32>
      %54 = vector.shape_cast %12 : vector<4x4xf32> to vector<4x1x4xf32>
      tpu.vector_store %arg5[%c0_37, %c13, %c0_38], %54 {strides = array<i32>} : memref<4x15x4xf32, #tpu.memory_space<vmem>>, vector<4x1x4xf32>,
      %c0_39 = arith.constant 0 : index
      %c14 = arith.constant 14 : index
      %c0_40 = arith.constant 0 : index
      %55 = vector.load %arg5[%c0_39, %c14, %c0_40] : memref<4x15x4xf32, #tpu.memory_space<vmem>>, vector<4x1x4xf32>
      %56 = vector.shape_cast %55 : vector<4x1x4xf32> to vector<4x4xf32>
      %57 = vector.shape_cast %12 : vector<4x4xf32> to vector<4x1x4xf32>
      tpu.vector_store %arg5[%c0_39, %c14, %c0_40], %57 {strides = array<i32>} : memref<4x15x4xf32, #tpu.memory_space<vmem>>, vector<4x1x4xf32>,
    } else {
    }
    return
  }
  func.func @transform_0(%arg0: i32, %arg1: i32, %arg2: i32) -> (i32, i32) {
    %c0_i32 = arith.constant 0 : i32
    return %arg0, %arg2 : i32, i32
  }
  func.func @transform_1(%arg0: i32, %arg1: i32, %arg2: i32) -> (i32, i32) {
    %c0_i32 = arith.constant 0 : i32
    return %arg2, %arg1 : i32, i32
  }
  func.func @transform_2(%arg0: i32, %arg1: i32, %arg2: i32) -> (i32, i32, i32) {
    %c0_i32 = arith.constant 0 : i32
    %c0_i32_0 = arith.constant 0 : i32
    return %arg0, %c0_i32, %arg1 : i32, i32, i32
  }
}

</mosaic_0001>

<llo_original>
// kernel: cat_mm.1
$region0: #{cat_mm.1}
  #allocation0 [shape = 'u32[]', space=smem, size = 0x4, offset = 0x4, fixed_abs, tag = 'smem constant byte address 0x4 - core index']
  #allocation1 [shape = 'u32[144,128]{1,0:T(1,128)}', space=vmem, size = 0x12000, scoped, tag = 'internal scratch']
  #allocation2 [shape = 'f32[4,4]{1,0:T(4,128)}', space=vmem, size = 0x800, scoped, tag = 'scratch operand']
  %s0 = inlined_call_operand.hbm [shape: f32[4,4], index: 0, kind: input, shape index: {}]
  %s1 = inlined_call_operand.hbm [shape: f32[4,4], index: 1, kind: input, shape index: {}]
  %s2 = inlined_call_operand.vmem [shape: f32[4,15,4], index: 2, kind: output, shape index: {}]
  %s3 = sld [smem:[#allocation0]]
  $region38: #{cat_mm.1} parent=0
    _
  %s5 = ssub.s32 1, %s3
  %s6 = scalar_select 0, %s5, %s3
  $region1: #{cat_mm.1} parent=0
    #allocation3 [shape = 'u8[2048]{0}', space=vmem, size = 0x800, scoped, tag = 'input window, operand 0, single buffered']
    #allocation4 [shape = 's32[1]{0}', space=sflag, size = 0x4, scoped, tag = 'scoped memory for cat_mm.1']
    #allocation5 [shape = 'u8[2048]{0}', space=vmem, size = 0x800, scoped, tag = 'input window, operand 1, single buffered']
    #allocation6 [shape = 's32[1]{0}', space=sflag, size = 0x4, scoped, tag = 'scoped memory for cat_mm.1']
    %7 = vsyncpa [#allocation4], 0
    %8 = vsyncpa [#allocation6], 0
    // Predicated region
    $region2: #{cat_mm.1} parent=1 // pred_check
      _
    $region3: #{cat_mm.1} parent=1 // pred_check_branch
      %10 = sbr.rel (0) target = $region5
    $region4: #{cat_mm.1} parent=1 // pred_region
      %s12 = ssub.s32 64, 64
      %13 = vsyncadd [#allocation4], %s12
      %s15 = sshll.u32 [#allocation3], 4
      %s16 = int_to_ptr.vmem [resolvable:$true] %s15
      %18 = dma.hbm_to_vmem [thread:$0]  %s0, 64, %s16, [#allocation4]
    $region5: #{cat_mm.1} parent=1 // pred_fallthru
      _
    // Predicated region
    $region6: #{cat_mm.1} parent=1 // pred_check
      _
    $region7: #{cat_mm.1} parent=1 // pred_check_branch
      %20 = sbr.rel (0) target = $region9
    $region8: #{cat_mm.1} parent=1 // pred_region
      %s22 = ssub.s32 64, 64
      %23 = vsyncadd [#allocation6], %s22
      %s25 = sshll.u32 [#allocation5], 4
      %s26 = int_to_ptr.vmem [resolvable:$true] %s25
      %28 = dma.hbm_to_vmem [thread:$0]  %s1, 64, %s26, [#allocation6]
    $region9: #{cat_mm.1} parent=1 // pred_fallthru
      _
    // Predicated region
    $region10: #{cat_mm.1} parent=1 // pred_check
      _
    $region11: #{cat_mm.1} parent=1 // pred_check_branch
      %30 = sbr.rel (0) target = $region13
    $region12: #{cat_mm.1} parent=1 // pred_region
      %31 = dma.done [#allocation4], 64
    $region13: #{cat_mm.1} parent=1 // pred_fallthru
      _
    // Predicated region
    $region14: #{cat_mm.1} parent=1 // pred_check
      _
    $region15: #{cat_mm.1} parent=1 // pred_check_branch
      %33 = sbr.rel (0) target = $region17
    $region16: #{cat_mm.1} parent=1 // pred_region
      %34 = dma.done [#allocation6], 64
    $region17: #{cat_mm.1} parent=1 // pred_fallthru
      _
    %v35 = vld [vmem:[#allocation3] sm:$0xf]
    %v36 = vld [vmem:[#allocation5] sm:$0xf]
    %vm37 = vcmask 31744
    %v39 = vsel %vm37, %v35, 0
    %vm41 = vcmask 1043456
    %v43 = vsel %vm41, %v36, 0
    %45 = vmatprep.subr.mxu0 0.0
    %46 = vmatpush1.msra.mxu0 %v43
    %47 = vmatprep.subr.mxu0 0.0
    %48 = vmatpush1.msra.mxu0 0.0
    %49 = vmatprep.subr.mxu0 0.0
    %50 = vmatpush1.msra.mxu0 0.0
    %51 = vmatprep.subr.mxu0 0.0
    %52 = vmatpush1.msra.mxu0 0.0
    %53 = vmatprep.subr.mxu0 0.0
    %54 = vmatpush1.msra.mxu0 0.0
    %55 = vmatprep.subr.mxu0 0.0
    %56 = vmatpush1.msra.mxu0 0.0
    %57 = vmatprep.subr.mxu0 0.0
    %58 = vmatpush1.msra.mxu0 0.0
    %59 = vmatprep.subr.mxu0 0.0
    %60 = vmatpush1.msra.mxu0 0.0
    %61 = vmatprep.subr.mxu0 0.0
    %62 = vmatpush1.msra.mxu0 0.0
    %63 = vmatprep.subr.mxu0 0.0
    %64 = vmatpush1.msra.mxu0 0.0
    %65 = vmatprep.subr.mxu0 0.0
    %66 = vmatpush1.msra.mxu0 0.0
    %67 = vmatprep.subr.mxu0 0.0
    %68 = vmatpush1.msra.mxu0 0.0
    %69 = vmatprep.subr.mxu0 0.0
    %70 = vmatpush1.msra.mxu0 0.0
    %71 = vmatprep.subr.mxu0 0.0
    %72 = vmatpush1.msra.mxu0 0.0
    %73 = vmatprep.subr.mxu0 0.0
    %74 = vmatpush1.msra.mxu0 0.0
    %75 = vmatprep.subr.mxu0 0.0
    %76 = vmatpush1.msra.mxu0 0.0
    %77 = vmatprep.subr.mxu0 0.0
    %78 = vmatpush1.msra.mxu0 0.0
    %79 = vmatprep.subr.mxu0 0.0
    %80 = vmatpush1.msra.mxu0 0.0
    %81 = vmatprep.subr.mxu0 0.0
    %82 = vmatpush1.msra.mxu0 0.0
    %83 = vmatprep.subr.mxu0 0.0
    %84 = vmatpush1.msra.mxu0 0.0
    %85 = vmatprep.subr.mxu0 0.0
    %86 = vmatpush1.msra.mxu0 0.0
    %87 = vmatprep.subr.mxu0 0.0
    %88 = vmatpush1.msra.mxu0 0.0
    %89 = vmatprep.subr.mxu0 0.0
    %90 = vmatpush1.msra.mxu0 0.0
    %91 = vmatprep.subr.mxu0 0.0
    %92 = vmatpush1.msra.mxu0 0.0
    %93 = vmatprep.subr.mxu0 0.0
    %94 = vmatpush1.msra.mxu0 0.0
    %95 = vmatprep.subr.mxu0 0.0
    %96 = vmatpush1.msra.mxu0 0.0
    %97 = vmatprep.subr.mxu0 0.0
    %98 = vmatpush1.msra.mxu0 0.0
    %99 = vmatprep.subr.mxu0 0.0
    %100 = vmatpush1.msra.mxu0 0.0
    %101 = vmatprep.subr.mxu0 0.0
    %102 = vmatpush1.msra.mxu0 0.0
    %103 = vmatprep.subr.mxu0 0.0
    %104 = vmatpush1.msra.mxu0 0.0
    %105 = vmatprep.subr.mxu0 0.0
    %106 = vmatpush1.msra.mxu0 0.0
    %107 = vmatprep.subr.mxu0 0.0
    %108 = vmatpush1.msra.mxu0 0.0
    %109 = vmatprep.mubr.f32.mxu0 0.0
    %110 = vmatmul.mubr.f32.gmra.mrb[0].mxu0 %v39
    %v111 = vpop.f32.mrb[0].mxu0
    %v112 = vadd.f32 0.0, %v111
    %v113 = vpop.f32.mrb[0].mxu0
    %114 = vdwg.mxu0
    %p115 = scmp.eq.s32.totalorder 0, 0
    // Predicated region
    $region18: #{cat_mm.1} parent=1 // pred_check
      %p116 = pneg %p115
    $region19: #{cat_mm.1} parent=1 // pred_check_branch
      %118 = sbr.rel (%p116) target = $region21
    $region20: #{cat_mm.1} parent=1 // pred_region
      %vm119 = vcmask 27648
      %120 = vst.msk [vmem:[#allocation2] sm:$0xf] %vm119, %v112
    $region21: #{cat_mm.1} parent=1 // pred_fallthru
      _
    %p121 = scmp.gt.s32.totalorder 0, 0
    // Predicated region
    $region22: #{cat_mm.1} parent=1 // pred_check
      %p122 = pneg %p121
    $region23: #{cat_mm.1} parent=1 // pred_check_branch
      %124 = sbr.rel (%p122) target = $region25
    $region24: #{cat_mm.1} parent=1 // pred_region
      %v125 = vld [vmem:[#allocation2] sm:$0xf]
      %v126 = vadd.f32 %v125, %v112
      %vm127 = vcmask 27648
      %128 = vst.msk [vmem:[#allocation2] sm:$0xf] %vm127, %v126
    $region25: #{cat_mm.1} parent=1 // pred_fallthru
      _
    // Predicated region
    $region26: #{cat_mm.1} parent=1 // pred_check
      %p129 = pneg %p115
    $region27: #{cat_mm.1} parent=1 // pred_check_branch
      %131 = sbr.rel (%p129) target = $region29
    $region28: #{cat_mm.1} parent=1 // pred_region
      %v132 = vld [vmem:[#allocation2] sm:$0xf]
      %v135 = vunpack.c.l.s4 1966171168
      %v136 = vunpack.c.0.s8 %v135
      %v137 = vlaneseq
      %v138 = vshrl.u32 %v137, 7
      %v139 = vsub.s32 %v136, %v138
      %v140 = vrot.slane %v132, %v139
      %v141 = vcombine.high %v140, %v140
      %v143 = vunpack.c.l.s4 1966171168
      %v144 = vunpack.c.0.s8 %v143
      %v145 = vlaneseq
      %v146 = vshrl.u32 %v145, 7
      %v147 = vsub.s32 %v144, %v146
      %v148 = vrot.slane %v140, %v147
      %v150 = vunpack.c.l.s4 1966171168
      %v151 = vunpack.c.0.s8 %v150
      %v152 = vlaneseq
      %v153 = vshrl.u32 %v152, 7
      %v154 = vsub.s32 %v151, %v153
      %v155 = vrot.slane %v141, %v154
      %v156 = vcombine.high %v148, %v148
      %v157 = vcombine.high %v155, %v155
      %vm162 = vcmask 24576
      %163 = vst.msk [vmem:[%s2] sm:$0x1] %vm162, %v148
      %164 = vst.msk [vmem:[%s2 + $0x10] sm:$0x1] %vm162, %v155
      %165 = vst.msk [vmem:[%s2 + $0x20] sm:$0x1] %vm162, %v156
      %166 = vst.msk [vmem:[%s2 + $0x30] sm:$0x1] %vm162, %v157
      %167 = vst.msk [vmem:[%s2 + $0x1] sm:$0x1] %vm162, %v148
      %168 = vst.msk [vmem:[%s2 + $0x11] sm:$0x1] %vm162, %v155
      %169 = vst.msk [vmem:[%s2 + $0x21] sm:$0x1] %vm162, %v156
      %170 = vst.msk [vmem:[%s2 + $0x31] sm:$0x1] %vm162, %v157
      %171 = vst.msk [vmem:[%s2 + $0x2] sm:$0x1] %vm162, %v148
      %172 = vst.msk [vmem:[%s2 + $0x12] sm:$0x1] %vm162, %v155
      %173 = vst.msk [vmem:[%s2 + $0x22] sm:$0x1] %vm162, %v156
      %174 = vst.msk [vmem:[%s2 + $0x32] sm:$0x1] %vm162, %v157
      %175 = vst.msk [vmem:[%s2 + $0x3] sm:$0x1] %vm162, %v148
      %176 = vst.msk [vmem:[%s2 + $0x13] sm:$0x1] %vm162, %v155
      %177 = vst.msk [vmem:[%s2 + $0x23] sm:$0x1] %vm162, %v156
      %178 = vst.msk [vmem:[%s2 + $0x33] sm:$0x1] %vm162, %v157
      %179 = vst.msk [vmem:[%s2 + $0x4] sm:$0x1] %vm162, %v148
      %180 = vst.msk [vmem:[%s2 + $0x14] sm:$0x1] %vm162, %v155
      %181 = vst.msk [vmem:[%s2 + $0x24] sm:$0x1] %vm162, %v156
      %182 = vst.msk [vmem:[%s2 + $0x34] sm:$0x1] %vm162, %v157
      %183 = vst.msk [vmem:[%s2 + $0x5] sm:$0x1] %vm162, %v148
      %184 = vst.msk [vmem:[%s2 + $0x15] sm:$0x1] %vm162, %v155
      %185 = vst.msk [vmem:[%s2 + $0x25] sm:$0x1] %vm162, %v156
      %186 = vst.msk [vmem:[%s2 + $0x35] sm:$0x1] %vm162, %v157
      %187 = vst.msk [vmem:[%s2 + $0x6] sm:$0x1] %vm162, %v148
      %188 = vst.msk [vmem:[%s2 + $0x16] sm:$0x1] %vm162, %v155
      %189 = vst.msk [vmem:[%s2 + $0x26] sm:$0x1] %vm162, %v156
      %190 = vst.msk [vmem:[%s2 + $0x36] sm:$0x1] %vm162, %v157
      %191 = vst.msk [vmem:[%s2 + $0x7] sm:$0x1] %vm162, %v148
      %192 = vst.msk [vmem:[%s2 + $0x17] sm:$0x1] %vm162, %v155
      %193 = vst.msk [vmem:[%s2 + $0x27] sm:$0x1] %vm162, %v156
      %194 = vst.msk [vmem:[%s2 + $0x37] sm:$0x1] %vm162, %v157
      %195 = vst.msk [vmem:[%s2 + $0x8] sm:$0x1] %vm162, %v148
      %196 = vst.msk [vmem:[%s2 + $0x18] sm:$0x1] %vm162, %v155
      %197 = vst.msk [vmem:[%s2 + $0x28] sm:$0x1] %vm162, %v156
      %198 = vst.msk [vmem:[%s2 + $0x38] sm:$0x1] %vm162, %v157
      %199 = vst.msk [vmem:[%s2 + $0x9] sm:$0x1] %vm162, %v148
      %200 = vst.msk [vmem:[%s2 + $0x19] sm:$0x1] %vm162, %v155
      %201 = vst.msk [vmem:[%s2 + $0x29] sm:$0x1] %vm162, %v156
      %202 = vst.msk [vmem:[%s2 + $0x39] sm:$0x1] %vm162, %v157
      %203 = vst.msk [vmem:[%s2 + $0xa] sm:$0x1] %vm162, %v148
      %204 = vst.msk [vmem:[%s2 + $0x1a] sm:$0x1] %vm162, %v155
      %205 = vst.msk [vmem:[%s2 + $0x2a] sm:$0x1] %vm162, %v156
      %206 = vst.msk [vmem:[%s2 + $0x3a] sm:$0x1] %vm162, %v157
      %207 = vst.msk [vmem:[%s2 + $0xb] sm:$0x1] %vm162, %v148
      %208 = vst.msk [vmem:[%s2 + $0x1b] sm:$0x1] %vm162, %v155
      %209 = vst.msk [vmem:[%s2 + $0x2b] sm:$0x1] %vm162, %v156
      %210 = vst.msk [vmem:[%s2 + $0x3b] sm:$0x1] %vm162, %v157
      %211 = vst.msk [vmem:[%s2 + $0xc] sm:$0x1] %vm162, %v148
      %212 = vst.msk [vmem:[%s2 + $0x1c] sm:$0x1] %vm162, %v155
      %213 = vst.msk [vmem:[%s2 + $0x2c] sm:$0x1] %vm162, %v156
      %214 = vst.msk [vmem:[%s2 + $0x3c] sm:$0x1] %vm162, %v157
      %215 = vst.msk [vmem:[%s2 + $0xd] sm:$0x1] %vm162, %v148
      %216 = vst.msk [vmem:[%s2 + $0x1d] sm:$0x1] %vm162, %v155
      %217 = vst.msk [vmem:[%s2 + $0x2d] sm:$0x1] %vm162, %v156
      %218 = vst.msk [vmem:[%s2 + $0x3d] sm:$0x1] %vm162, %v157
      %219 = vst.msk [vmem:[%s2 + $0xe] sm:$0x1] %vm162, %v148
      %220 = vst.msk [vmem:[%s2 + $0x1e] sm:$0x1] %vm162, %v155
      %221 = vst.msk [vmem:[%s2 + $0x2e] sm:$0x1] %vm162, %v156
      %222 = vst.msk [vmem:[%s2 + $0x3e] sm:$0x1] %vm162, %v157
    $region29: #{cat_mm.1} parent=1 // pred_fallthru
      _
    // Predicated region
    $region30: #{cat_mm.1} parent=1 // pred_check
      _
    $region31: #{cat_mm.1} parent=1 // pred_check_branch
      %224 = sbr.rel (0) target = $region33
    $region32: #{cat_mm.1} parent=1 // pred_region
      _
    $region33: #{cat_mm.1} parent=1 // pred_fallthru
      _
    // Predicated region
    $region34: #{cat_mm.1} parent=1 // pred_check
      _
    $region35: #{cat_mm.1} parent=1 // pred_check_branch
      %226 = sbr.rel (0) target = $region37
    $region36: #{cat_mm.1} parent=1 // pred_region
      _
    $region37: #{cat_mm.1} parent=1 // pred_fallthru
      _
    %227 = vsyncpa [#allocation4], 1
    %228 = vsyncpa [#allocation6], 1

</llo_original>
